<compile_context>
chip_gen: v6e
topology: v6e:2x2x1
jax: 0.10.0
libtpu: 0.0.40
codegen_flags: <defaults>
</compile_context>

<pallas_src>
import functools

import jax
import jax.numpy as jnp
from jax.experimental import pallas as pl
from jax.experimental.pallas import tpu as pltpu


_LANE = 128
_BN_EPS = 1e-5
# Flipped-kernel tap indices of the 4-tap transposed conv, per output parity.
_PHASE_TAPS = ((3, 1), (2, 0))


# ----------------------------- Pallas kernels ------------------------------

def _conv_bn_relu_kernel(p_ref, w_ref, g_ref, b_ref, o_ref, *, eps):
    """(M,K)bf16 @ (K,Ct)bf16 -> f32 acc, one-pass train BatchNorm, ReLU, bf16."""
    y = jnp.dot(p_ref[...], w_ref[...], preferred_element_type=jnp.float32)
    inv_m = 1.0 / y.shape[0]
    mean = jnp.sum(y, axis=0, keepdims=True) * inv_m
    var = jnp.maximum(
        jnp.sum(y * y, axis=0, keepdims=True) * inv_m - mean * mean, 0.0)
    scale = jax.lax.rsqrt(var + eps) * g_ref[...]
    shift = b_ref[...] - mean * scale
    o_ref[...] = jnp.maximum(y * scale + shift, 0.0).astype(o_ref.dtype)


def _tconv_bn_relu_kernel(p_ref, w_ref, g_ref, b_ref, o_ref, *, eps):
    """4-phase transposed conv: per-phase (Mp,K)@(K,Ct) matmuls, shared one-pass
    batch statistics over all 4*Mp output rows, BatchNorm + ReLU, bf16 out."""
    ys = [jnp.dot(p_ref[ph], w_ref[ph], preferred_element_type=jnp.float32)
          for ph in range(4)]
    inv_total = 1.0 / (4.0 * ys[0].shape[0])
    mean = jnp.sum(ys[0] + ys[1] + ys[2] + ys[3], axis=0, keepdims=True) * inv_total
    sq = sum(jnp.sum(yp * yp, axis=0, keepdims=True) for yp in ys)
    var = jnp.maximum(sq * inv_total - mean * mean, 0.0)
    scale = jax.lax.rsqrt(var + eps) * g_ref[...]
    shift = b_ref[...] - mean * scale
    for ph in range(4):
        o_ref[ph] = jnp.maximum(ys[ph] * scale + shift, 0.0).astype(o_ref.dtype)


def _tconv_bias_tanh_kernel(p_ref, w_ref, b_ref, o_ref):
    """One transposed-conv output-parity phase: matmul + bias + tanh
    (lane-dense padded C=128)."""
    y = jnp.dot(p_ref[0], w_ref[0], preferred_element_type=jnp.float32) + b_ref[...]
    o_ref[0] = jnp.tanh(y)


# ----------------------------- pallas_call wrappers -------------------------

def _ctile(c):
    """128-lane Cout tile where possible, else the full (lane-aligned-enough) C."""
    return _LANE if c % _LANE == 0 else c


def conv_bn_relu(patches, w, gamma, beta, *, eps=_BN_EPS):
    M, K = patches.shape
    C = w.shape[1]
    ct = _ctile(C)
    return pl.pallas_call(
        functools.partial(_conv_bn_relu_kernel, eps=eps),
        out_shape=jax.ShapeDtypeStruct((M, C), jnp.bfloat16),
        grid=(C // ct,),
        in_specs=[
            pl.BlockSpec((M, K), lambda i: (0, 0)),     # resident across C tiles
            pl.BlockSpec((K, ct), lambda i: (0, i)),    # streamed weight tiles
            pl.BlockSpec((1, ct), lambda i: (0, i)),
            pl.BlockSpec((1, ct), lambda i: (0, i)),
        ],
        out_specs=pl.BlockSpec((M, ct), lambda i: (0, i)),
        compiler_params=pltpu.CompilerParams(dimension_semantics=("parallel",)),
    )(patches, w, gamma, beta)


def tconv_bn_relu(patches, w, gamma, beta, *, eps=_BN_EPS):
    _, Mp, K = patches.shape
    C = w.shape[-1]
    ct = _ctile(C)
    return pl.pallas_call(
        functools.partial(_tconv_bn_relu_kernel, eps=eps),
        out_shape=jax.ShapeDtypeStruct((4, Mp, C), jnp.bfloat16),
        grid=(C // ct,),
        in_specs=[
            pl.BlockSpec((4, Mp, K), lambda i: (0, 0, 0)),   # resident patches
            pl.BlockSpec((4, K, ct), lambda i: (0, 0, i)),   # streamed weights
            pl.BlockSpec((1, ct), lambda i: (0, i)),
            pl.BlockSpec((1, ct), lambda i: (0, i)),
        ],
        out_specs=pl.BlockSpec((4, Mp, ct), lambda i: (0, 0, i)),
        compiler_params=pltpu.CompilerParams(dimension_semantics=("parallel",)),
    )(patches, w, gamma, beta)


def tconv_bias_tanh(patches, w, bias):
    _, Mp, K = patches.shape
    C = w.shape[-1]  # lane-padded to 128
    return pl.pallas_call(
        _tconv_bias_tanh_kernel,
        out_shape=jax.ShapeDtypeStruct((4, Mp, C), jnp.float32),
        grid=(4,),
        in_specs=[
            pl.BlockSpec((1, Mp, K), lambda i: (i, 0, 0)),
            pl.BlockSpec((1, K, C), lambda i: (i, 0, 0)),
            pl.BlockSpec((1, C), lambda i: (0, 0)),
        ],
        out_specs=pl.BlockSpec((1, Mp, C), lambda i: (i, 0, 0)),
        compiler_params=pltpu.CompilerParams(dimension_semantics=("parallel",)),
    )(patches, w, bias)


# ------------------------------ JAX glue ------------------------------------

def _im2col_nhwc(x, kh, kw, stride, pad):
    """NHWC im2col; patch feature ordering (kh, kw, c)."""
    N, H, W, C = x.shape
    xp = jnp.pad(x, ((0, 0), (pad, pad), (pad, pad), (0, 0)))
    Ho = (H + 2 * pad - kh) // stride + 1
    Wo = (W + 2 * pad - kw) // stride + 1
    cols = [xp[:, i:i + stride * Ho:stride, j:j + stride * Wo:stride, :]
            for i in range(kh) for j in range(kw)]
    p = jnp.stack(cols, axis=3).reshape(N * Ho * Wo, kh * kw * C)
    return p, (N, Ho, Wo)


def _tconv_phase_patches(x):
    """ConvTranspose2d(4,2,1) input -> 2x2 patches per output parity phase.

    x: (N, H, W, C) -> (4, N*H*W, 4*C); phase p = 2*py + px, feature ordering
    (r, s, c), matching _prep_tconv_weight."""
    N, H, W, C = x.shape
    phases = []
    for py in range(2):
        for px in range(2):
            xp = jnp.pad(x, ((0, 0), (1 - py, py), (1 - px, px), (0, 0)))
            cols = [xp[:, r:r + H, s:s + W, :] for r in range(2) for s in range(2)]
            phases.append(jnp.stack(cols, axis=3).reshape(N * H * W, 4 * C))
    return jnp.stack(phases, axis=0), (N, H, W)


def _scatter_phases(y, N, H, W):
    """(4, N*H*W, C) parity-phase outputs -> (N, 2H, 2W, C)."""
    C = y.shape[-1]
    y = y.reshape(2, 2, N, H, W, C).transpose(2, 3, 0, 4, 1, 5)
    return y.reshape(N, 2 * H, 2 * W, C)


def _down_block(p, h):
    """Conv2d(4,2,1) + BatchNorm2d(train) + ReLU, NHWC bf16 activations."""
    patches, (N, Ho, Wo) = _im2col_nhwc(h.astype(jnp.bfloat16), 4, 4, 2, 1)
    y = conv_bn_relu(patches, p["w"], p["gamma"], p["beta"])
    return y.reshape(N, Ho, Wo, p["w"].shape[1])


def _up_block(p, h):
    """ConvTranspose2d(4,2,1) + BatchNorm2d(train) + ReLU, NHWC bf16."""
    patches, (N, H, W) = _tconv_phase_patches(h.astype(jnp.bfloat16))
    y = tconv_bn_relu(patches, p["w"], p["gamma"], p["beta"])
    return _scatter_phases(y, N, H, W)


def _final_block(p, h, out_channels):
    """ConvTranspose2d(4,2,1) + Tanh; lane-dense padded Cout, sliced back."""
    patches, (N, H, W) = _tconv_phase_patches(h.astype(jnp.bfloat16))
    y = tconv_bias_tanh(patches, p["w"], p["b"])[:, :, :out_channels]
    return _scatter_phases(y, N, H, W)


def unet_forward(params, x, out_channels=3):
    h = jnp.transpose(x, (0, 2, 3, 1))               # NCHW -> NHWC, once
    d1 = _down_block(params["down1"], h)
    d2 = _down_block(params["down2"], d1)
    d3 = _down_block(params["down3"], d2)
    d4 = _down_block(params["down4"], d3)
    u1 = _up_block(params["up1"], d4)
    u2 = _up_block(params["up2"], jnp.concatenate([u1, d3], axis=-1))
    u3 = _up_block(params["up3"], jnp.concatenate([u2, d2], axis=-1))
    u4 = _final_block(params["up4"], jnp.concatenate([u3, d1], axis=-1),
                      out_channels)
    return jnp.transpose(u4, (0, 3, 1, 2))           # NHWC -> NCHW, once


# --------------------------- parameter handling ------------------------------

def init_params(key, in_channels=6, out_channels=3):
    """Parameters in PyTorch layout (Conv2d: (Cout,Cin,4,4); ConvTranspose2d:
    (Cin,Cout,4,4))."""
    def make(key, wshape, cout, bn):
        ks = jax.random.split(key, 4)
        p = {"w": 0.05 * jax.random.normal(ks[0], wshape, jnp.float32),
             "b": 0.05 * jax.random.normal(ks[1], (cout,), jnp.float32)}
        if bn:
            p["gamma"] = 1.0 + 0.05 * jax.random.normal(ks[2], (cout,), jnp.float32)
            p["beta"] = 0.05 * jax.random.normal(ks[3], (cout,), jnp.float32)
        return p

    ks = jax.random.split(key, 8)
    return {
        "down1": make(ks[0], (64, in_channels, 4, 4), 64, True),
        "down2": make(ks[1], (128, 64, 4, 4), 128, True),
        "down3": make(ks[2], (256, 128, 4, 4), 256, True),
        "down4": make(ks[3], (512, 256, 4, 4), 512, True),
        "up1": make(ks[4], (512, 256, 4, 4), 256, True),
        "up2": make(ks[5], (512, 128, 4, 4), 128, True),
        "up3": make(ks[6], (256, 64, 4, 4), 64, True),
        "up4": make(ks[7], (128, out_channels, 4, 4), out_channels, False),
    }


def _prep_tconv_weight(w):
    """(Cin, Cout, 4, 4) ConvTranspose2d weight -> (4, 4*Cin, Cout) bf16 phase
    weights; phase p = 2*py + px, feature ordering (r, s, ci)."""
    cin, cout = w.shape[0], w.shape[1]
    wf = jnp.transpose(w, (2, 3, 0, 1))              # (kh, kw, Cin, Cout)
    subs = []
    for py in range(2):
        for px in range(2):
            ws = wf[jnp.array(_PHASE_TAPS[py])][:, jnp.array(_PHASE_TAPS[px])]
            subs.append(ws.reshape(4 * cin, cout))
    return jnp.stack(subs, axis=0).astype(jnp.bfloat16)


def prepare_params(params):
    """One-time conversion to kernel layouts: pre-transposed bf16 weight
    matrices, (1, C) BN affine rows, lane-padded final layer.  Conv biases of
    BatchNorm'd layers are dropped (exactly cancelled by train-mode BN)."""
    prep = {}
    for name in ("down1", "down2", "down3", "down4"):
        p = params[name]
        cout = p["w"].shape[0]
        w = jnp.transpose(p["w"], (2, 3, 1, 0)).reshape(-1, cout)  # (kh,kw,ci)xCout
        prep[name] = {"w": w.astype(jnp.bfloat16),
                      "gamma": p["gamma"].reshape(1, cout),
                      "beta": p["beta"].reshape(1, cout)}
    for name in ("up1", "up2", "up3"):
        p = params[name]
        cout = p["w"].shape[1]
        prep[name] = {"w": _prep_tconv_weight(p["w"]),
                      "gamma": p["gamma"].reshape(1, cout),
                      "beta": p["beta"].reshape(1, cout)}
    p = params["up4"]
    w = _prep_tconv_weight(p["w"])                   # (4, 4*Cin, Cout)
    pad = _LANE - w.shape[-1]
    prep["up4"] = {"w": jnp.pad(w, ((0, 0), (0, 0), (0, pad))),
                   "b": jnp.pad(p["b"], (0, pad)).reshape(1, _LANE)}
    return prep


# --------------------- f32 XLA references (correctness) ---------------------

def _bn_relu_ref(y, gamma, beta, eps=_BN_EPS):
    mean = jnp.mean(y, axis=(0, 1, 2), keepdims=True)
    var = jnp.mean((y - mean) ** 2, axis=(0, 1, 2), keepdims=True)
    return jnp.maximum((y - mean) * jax.lax.rsqrt(var + eps) * gamma + beta, 0.0)


def _conv_block_ref(p, x):
    """f32 reference: Conv2d(4,2,1)+bias, train-mode BN, ReLU (PyTorch layout)."""
    w = jnp.transpose(p["w"], (2, 3, 1, 0))                      # HWIO
    y = jax.lax.conv_general_dilated(
        x, w, window_strides=(2, 2), padding=((1, 1), (1, 1)),
        dimension_numbers=("NHWC", "HWIO", "NHWC")) + p["b"]
    return _bn_relu_ref(y, p["gamma"], p["beta"])


def _tconv_block_ref(p, x):
    """f32 reference: ConvTranspose2d(4,2,1)+bias, train-mode BN, ReLU."""
    k = jnp.transpose(p["w"][:, :, ::-1, ::-1], (2, 3, 0, 1))    # flipped, HWIO
    y = jax.lax.conv_general_dilated(
        x, k, window_strides=(1, 1), padding=((2, 2), (2, 2)),
        lhs_dilation=(2, 2), dimension_numbers=("NHWC", "HWIO", "NHWC")) + p["b"]
    return _bn_relu_ref(y, p["gamma"], p["beta"])


if __name__ == "__main__":
    key = jax.random.PRNGKey(0)
    pkey, xkey = jax.random.split(key)
    params = init_params(pkey)
    prep = prepare_params(params)                    # one-time weight repack
    x = jax.random.normal(xkey, (2, 6, 16, 16), jnp.float32)   # NCHW, like PyTorch

    # Single-layer numerical checks vs. f32 XLA references (well-conditioned
    # batch statistics; validates im2col / phase-tap decomposition + bias drop).
    x_nhwc = jnp.transpose(x, (0, 2, 3, 1)).astype(jnp.bfloat16).astype(jnp.float32)
    d1 = jax.jit(_down_block)(prep["down1"], x_nhwc)
    d1_ref = _conv_block_ref(params["down1"], x_nhwc)
    assert float(jnp.max(jnp.abs(d1.astype(jnp.float32) - d1_ref))) < 0.15

    xt = jax.random.normal(jax.random.PRNGKey(1), (2, 4, 4, 256), jnp.float32)
    xt = xt.astype(jnp.bfloat16).astype(jnp.float32)
    u3 = jax.jit(_up_block)(prep["up3"], xt)
    u3_ref = _tconv_block_ref(params["up3"], xt)
    assert float(jnp.max(jnp.abs(u3.astype(jnp.float32) - u3_ref))) < 0.15

    # Full forward pass.
    out = jax.jit(unet_forward)(prep, x)
    out = jax.block_until_ready(out)

    assert out.shape == (2, 3, 16, 16), out.shape
    assert bool(jnp.all(jnp.isfinite(out)))
    assert bool(jnp.all(jnp.abs(out) <= 1.0))        # tanh output range
    print("KERNEL_OK")
</pallas_src>

<mosaic_0001>
module attributes {stable_mosaic.version = 11 : i64} {
  func.func @_conv_bn_relu_kernel(%arg0: i32, %arg1: memref<128x96xbf16, #tpu.memory_space<vmem>>, %arg2: memref<96x64xbf16, #tpu.memory_space<vmem>>, %arg3: memref<1x64xf32, #tpu.memory_space<vmem>>, %arg4: memref<1x64xf32, #tpu.memory_space<vmem>>, %arg5: memref<128x64xbf16, #tpu.memory_space<vmem>>) attributes {dimension_semantics = [#tpu.dimension_semantics<parallel>], iteration_bounds = array<i64: 1>, scalar_prefetch = 0 : i64, scratch_operands = 0 : i64, tpu.core_type = #tpu.core_type<tc>, window_params = [{pipeline_mode = #tpu.pipeline_mode<synchronous>, transform_indices = @transform_0, window_bounds = array<i64: 128, 96>}, {transform_indices = @transform_1, window_bounds = array<i64: 96, 64>}, {transform_indices = @transform_2, window_bounds = array<i64: 1, 64>}, {transform_indices = @transform_3, window_bounds = array<i64: 1, 64>}, {transform_indices = @transform_4, window_bounds = array<i64: 128, 64>}]} {
    %c0 = arith.constant 0 : index
    %c0_0 = arith.constant 0 : index
    %0 = vector.load %arg1[%c0, %c0_0] : memref<128x96xbf16, #tpu.memory_space<vmem>>, vector<128x96xbf16>
    %c0_1 = arith.constant 0 : index
    %c0_2 = arith.constant 0 : index
    %1 = vector.load %arg2[%c0_1, %c0_2] : memref<96x64xbf16, #tpu.memory_space<vmem>>, vector<96x64xbf16>
    %cst = arith.constant dense<0.000000e+00> : vector<128x64xf32>
    %2 = tpu.matmul %0, %1, %cst {dimension_numbers = #tpu.dot_dimension_numbers<[1], [0], [0], [1], [0, 0, 1, 1], [], []>} : vector<128x96xbf16>, vector<96x64xbf16>, vector<128x64xf32> -> vector<128x64xf32>
    %cst_3 = arith.constant dense<0.000000e+00> : vector<64xf32>
    %3 = vector.multi_reduction <add>, %2, %cst_3 [0] : vector<128x64xf32> to vector<64xf32>
    %4 = vector.shape_cast %3 : vector<64xf32> to vector<1x64xf32>
    %cst_4 = arith.constant 7.812500e-03 : f32
    %5 = vector.broadcast %cst_4 : f32 to vector<1x64xf32>
    %6 = arith.mulf %4, %5 : vector<1x64xf32>
    %7 = arith.mulf %2, %2 : vector<128x64xf32>
    %cst_5 = arith.constant dense<0.000000e+00> : vector<64xf32>
    %8 = vector.multi_reduction <add>, %7, %cst_5 [0] : vector<128x64xf32> to vector<64xf32>
    %9 = vector.shape_cast %8 : vector<64xf32> to vector<1x64xf32>
    %cst_6 = arith.constant 7.812500e-03 : f32
    %10 = vector.broadcast %cst_6 : f32 to vector<1x64xf32>
    %11 = arith.mulf %9, %10 : vector<1x64xf32>
    %12 = arith.mulf %6, %6 : vector<1x64xf32>
    %13 = arith.subf %11, %12 : vector<1x64xf32>
    %cst_7 = arith.constant 0.000000e+00 : f32
    %14 = vector.broadcast %cst_7 : f32 to vector<1x64xf32>
    %15 = arith.maximumf %13, %14 : vector<1x64xf32>
    %cst_8 = arith.constant 9.99999974E-6 : f32
    %16 = vector.broadcast %cst_8 : f32 to vector<1x64xf32>
    %17 = arith.addf %15, %16 : vector<1x64xf32>
    %18 = math.rsqrt %17 : vector<1x64xf32>
    %c0_9 = arith.constant 0 : index
    %c0_10 = arith.constant 0 : index
    %19 = vector.load %arg3[%c0_9, %c0_10] : memref<1x64xf32, #tpu.memory_space<vmem>>, vector<1x64xf32>
    %20 = arith.mulf %18, %19 : vector<1x64xf32>
    %c0_11 = arith.constant 0 : index
    %c0_12 = arith.constant 0 : index
    %21 = vector.load %arg4[%c0_11, %c0_12] : memref<1x64xf32, #tpu.memory_space<vmem>>, vector<1x64xf32>
    %22 = arith.mulf %6, %20 : vector<1x64xf32>
    %23 = arith.subf %21, %22 : vector<1x64xf32>
    %24 = vector.broadcast %20 : vector<1x64xf32> to vector<128x64xf32>
    %25 = arith.mulf %2, %24 : vector<128x64xf32>
    %26 = vector.broadcast %23 : vector<1x64xf32> to vector<128x64xf32>
    %27 = arith.addf %25, %26 : vector<128x64xf32>
    %cst_13 = arith.constant 0.000000e+00 : f32
    %28 = vector.broadcast %cst_13 : f32 to vector<128x64xf32>
    %29 = arith.maximumf %27, %28 : vector<128x64xf32>
    %30 = arith.truncf %29 : vector<128x64xf32> to vector<128x64xbf16>
    %c0_14 = arith.constant 0 : index
    %c0_15 = arith.constant 0 : index
    %31 = vector.load %arg5[%c0_14, %c0_15] : memref<128x64xbf16, #tpu.memory_space<vmem>>, vector<128x64xbf16>
    tpu.vector_store %arg5[%c0_14, %c0_15], %30 {strides = array<i32>} : memref<128x64xbf16, #tpu.memory_space<vmem>>, vector<128x64xbf16>,
    return
  }
  func.func @transform_0(%arg0: i32) -> (i32, i32) {
    %c0_i32 = arith.constant 0 : i32
    %c0_i32_0 = arith.constant 0 : i32
    %c0_i32_1 = arith.constant 0 : i32
    return %c0_i32, %c0_i32_0 : i32, i32
  }
  func.func @transform_1(%arg0: i32) -> (i32, i32) {
    %c0_i32 = arith.constant 0 : i32
    %c0_i32_0 = arith.constant 0 : i32
    return %c0_i32, %arg0 : i32, i32
  }
  func.func @transform_2(%arg0: i32) -> (i32, i32) {
    %c0_i32 = arith.constant 0 : i32
    %c0_i32_0 = arith.constant 0 : i32
    return %c0_i32, %arg0 : i32, i32
  }
  func.func @transform_3(%arg0: i32) -> (i32, i32) {
    %c0_i32 = arith.constant 0 : i32
    %c0_i32_0 = arith.constant 0 : i32
    return %c0_i32, %arg0 : i32, i32
  }
  func.func @transform_4(%arg0: i32) -> (i32, i32) {
    %c0_i32 = arith.constant 0 : i32
    %c0_i32_0 = arith.constant 0 : i32
    return %c0_i32, %arg0 : i32, i32
  }
}

</mosaic_0001>

<llo_original>
// kernel: _down_block.1
$region0: #{_down_block.1}
  #allocation0 [shape = 'u32[]', space=smem, size = 0x4, offset = 0x4, fixed_abs, tag = 'smem constant byte address 0x4 - core index']
  #allocation1 [shape = 'u32[144,128]{1,0:T(1,128)}', space=vmem, size = 0x12000, scoped, tag = 'internal scratch']
  %s0 = inlined_call_operand.vmem [shape: bf16[128,96], index: 0, kind: input, shape index: {}]
  %s1 = inlined_call_operand.vmem [shape: bf16[96,64], index: 1, kind: input, shape index: {}]
  %s2 = inlined_call_operand.vmem [shape: f32[1,64], index: 2, kind: input, shape index: {}]
  %s3 = inlined_call_operand.vmem [shape: f32[1,64], index: 3, kind: input, shape index: {}]
  %s4 = inlined_call_operand.hbm [shape: bf16[128,64], index: 4, kind: output, shape index: {}]
  %s5 = sld [smem:[#allocation0]]
  $region26: #{_down_block.1} parent=0
    _
  %s7 = ssub.s32 1, %s5
  %s8 = scalar_select 0, %s7, %s5
  $region1: #{_down_block.1} parent=0
    #allocation2 [shape = 'u8[32768]{0}', space=vmem, size = 0x8000, scoped, tag = 'output window, operand 0, single buffered']
    #allocation3 [shape = 's32[1]{0}', space=sflag, size = 0x4, scoped, tag = 'scoped memory for _down_block.1']
    %9 = vsyncpa [#allocation3], 0
    // Predicated region
    $region2: #{_down_block.1} parent=1 // pred_check
      _
    $region3: #{_down_block.1} parent=1 // pred_check_branch
      %11 = sbr.rel (0) target = $region5
    $region4: #{_down_block.1} parent=1 // pred_region
      _
    $region5: #{_down_block.1} parent=1 // pred_fallthru
      _
    // Predicated region
    $region6: #{_down_block.1} parent=1 // pred_check
      _
    $region7: #{_down_block.1} parent=1 // pred_check_branch
      %13 = sbr.rel (0) target = $region9
    $region8: #{_down_block.1} parent=1 // pred_region
      _
    $region9: #{_down_block.1} parent=1 // pred_fallthru
      _
    // Predicated region
    $region10: #{_down_block.1} parent=1 // pred_check
      _
    $region11: #{_down_block.1} parent=1 // pred_check_branch
      %15 = sbr.rel (0) target = $region13
    $region12: #{_down_block.1} parent=1 // pred_region
      _
    $region13: #{_down_block.1} parent=1 // pred_fallthru
      _
    // Predicated region
    $region14: #{_down_block.1} parent=1 // pred_check
      _
    $region15: #{_down_block.1} parent=1 // pred_check_branch
      %17 = sbr.rel (0) target = $region17
    $region16: #{_down_block.1} parent=1 // pred_region
      _
    $region17: #{_down_block.1} parent=1 // pred_fallthru
      _
    %v19 = vld [vmem:[%s0] sm:$0xf]
    %v20 = vld [vmem:[%s0 + $0x4] sm:$0xf]
    %v21 = vld [vmem:[%s0 + $0x8] sm:$0xf]
    %v22 = vld [vmem:[%s0 + $0xc] sm:$0xf]
    %v23 = vld [vmem:[%s0 + $0x10] sm:$0xf]
    %v24 = vld [vmem:[%s0 + $0x14] sm:$0xf]
    %v25 = vld [vmem:[%s0 + $0x18] sm:$0xf]
    %v26 = vld [vmem:[%s0 + $0x1c] sm:$0xf]
    %v27 = vld [vmem:[%s0 + $0x20] sm:$0xf]
    %v28 = vld [vmem:[%s0 + $0x24] sm:$0xf]
    %v29 = vld [vmem:[%s0 + $0x28] sm:$0xf]
    %v30 = vld [vmem:[%s0 + $0x2c] sm:$0xf]
    %v31 = vld [vmem:[%s0 + $0x30] sm:$0xf]
    %v32 = vld [vmem:[%s0 + $0x34] sm:$0xf]
    %v33 = vld [vmem:[%s0 + $0x38] sm:$0xf]
    %v34 = vld [vmem:[%s0 + $0x3c] sm:$0xf]
    %v35 = vld [vmem:[%s1] sm:$0xf]
    %v36 = vld [vmem:[%s1 + $0x4] sm:$0xf]
    %v37 = vld [vmem:[%s1 + $0x8] sm:$0xf]
    %v38 = vld [vmem:[%s1 + $0xc] sm:$0xf]
    %v39 = vld [vmem:[%s1 + $0x10] sm:$0xf]
    %v40 = vld [vmem:[%s1 + $0x14] sm:$0xf]
    %v41 = vld [vmem:[%s1 + $0x18] sm:$0xf]
    %v42 = vld [vmem:[%s1 + $0x1c] sm:$0xf]
    %v43 = vld [vmem:[%s1 + $0x20] sm:$0xf]
    %v44 = vld [vmem:[%s1 + $0x24] sm:$0xf]
    %v45 = vld [vmem:[%s1 + $0x28] sm:$0xf]
    %v46 = vld [vmem:[%s1 + $0x2c] sm:$0xf]
    %v63 = vunpack.c.l.b16 %v19
    %v64 = vunpack.c.l.b16 %v20
    %v65 = vunpack.c.l.b16 %v21
    %v66 = vunpack.c.l.b16 %v22
    %v67 = vunpack.c.l.b16 %v23
    %v68 = vunpack.c.l.b16 %v24
    %v69 = vunpack.c.l.b16 %v25
    %v70 = vunpack.c.l.b16 %v26
    %v71 = vunpack.c.l.b16 %v27
    %v72 = vunpack.c.l.b16 %v28
    %v73 = vunpack.c.l.b16 %v29
    %v74 = vunpack.c.l.b16 %v30
    %v75 = vunpack.c.l.b16 %v31
    %v76 = vunpack.c.l.b16 %v32
    %v77 = vunpack.c.l.b16 %v33
    %v78 = vunpack.c.l.b16 %v34
    %v79 = vpack.c.b16 %v64, %v63
    %v80 = vpack.c.b16 %v66, %v65
    %v81 = vpack.c.b16 %v68, %v67
    %v82 = vpack.c.b16 %v70, %v69
    %v83 = vpack.c.b16 %v72, %v71
    %v84 = vpack.c.b16 %v74, %v73
    %v85 = vpack.c.b16 %v76, %v75
    %v86 = vpack.c.b16 %v78, %v77
    %v99 = vunpack.c.l.b16 %v35
    %v100 = vunpack.c.l.b16 %v36
    %v101 = vunpack.c.l.b16 %v37
    %v102 = vunpack.c.l.b16 %v38
    %v103 = vunpack.c.l.b16 %v39
    %v104 = vunpack.c.l.b16 %v40
    %v105 = vunpack.c.l.b16 %v41
    %v106 = vunpack.c.l.b16 %v42
    %v107 = vunpack.c.l.b16 %v43
    %v108 = vunpack.c.l.b16 %v44
    %v109 = vunpack.c.l.b16 %v45
    %v110 = vunpack.c.l.b16 %v46
    %v111 = vpack.c.b16 %v100, %v99
    %v112 = vpack.c.b16 %v102, %v101
    %v113 = vpack.c.b16 %v104, %v103
    %v114 = vpack.c.b16 %v106, %v105
    %v115 = vpack.c.b16 %v108, %v107
    %v116 = vpack.c.b16 %v110, %v109
    %vm123 = vcmask 785408
    %v125 = vsel %vm123, %v79, 0
    %v128 = vsel %vm123, %v80, 0
    %v131 = vsel %vm123, %v81, 0
    %v134 = vsel %vm123, %v82, 0
    %v137 = vsel %vm123, %v83, 0
    %v140 = vsel %vm123, %v84, 0
    %v143 = vsel %vm123, %v85, 0
    %v146 = vsel %vm123, %v86, 0
    %148 = vmatprep.subr.bf16.mxu0 0
    %149 = vmatpush1.bf16.msra.mxu0 0
    %150 = vmatprep.subr.bf16.mxu0 0
    %151 = vmatpush1.bf16.msra.mxu0 0
    %152 = vmatprep.subr.bf16.mxu0 0
    %153 = vmatpush1.bf16.msra.mxu0 %v116
    %154 = vmatprep.subr.bf16.mxu0 0
    %155 = vmatpush1.bf16.msra.mxu0 %v115
    %156 = vmatprep.subr.bf16.mxu0 0
    %157 = vmatpush1.bf16.msra.mxu0 %v114
    %158 = vmatprep.subr.bf16.mxu0 0
    %159 = vmatpush1.bf16.msra.mxu0 %v113
    %160 = vmatprep.subr.bf16.mxu0 0
    %161 = vmatpush1.bf16.msra.mxu0 %v112
    %162 = vmatprep.subr.bf16.mxu0 0
    %163 = vmatpush1.bf16.msra.mxu0 %v111
    %164 = vmatprep.subr.bf16.mxu0 0
    %165 = vmatpush2.bf16.msra.mxu0 0
    %166 = vmatprep.subr.bf16.mxu0 0
    %167 = vmatpush2.bf16.msra.mxu0 0
    %168 = vmatprep.subr.bf16.mxu0 0
    %169 = vmatpush2.bf16.msra.mxu0 0
    %170 = vmatprep.subr.bf16.mxu0 0
    %171 = vmatpush2.bf16.msra.mxu0 0
    %172 = vmatprep.subr.bf16.mxu0 0
    %173 = vmatpush2.bf16.msra.mxu0 0
    %174 = vmatprep.subr.bf16.mxu0 0
    %175 = vmatpush2.bf16.msra.mxu0 0
    %176 = vmatprep.subr.bf16.mxu0 0
    %177 = vmatpush2.bf16.msra.mxu0 0
    %178 = vmatprep.subr.bf16.mxu0 0
    %179 = vmatpush2.bf16.msra.mxu0 0
    %180 = vmatprep.mubr.bf16.mxu0 0
    %181 = vmatmul.mubr.bf16.gmra.mxu0 %v125
    %v182 = vpop.f32.mrf.mxu0
    %v183 = vadd.f32 0.0, %v182
    %v184 = vpop.f32.mrf.mxu0
    %v185 = vpop.f32.mrf.mxu0
    %v186 = vadd.f32 0.0, %v185
    %v187 = vpop.f32.mrf.mxu0
    %188 = vmatprep.mubr.bf16.mxu0 0
    %189 = vmatmul.mubr.bf16.gmra.mxu0 %v128
    %v190 = vpop.f32.mrf.mxu0
    %v191 = vadd.f32 0.0, %v190
    %v192 = vpop.f32.mrf.mxu0
    %v193 = vpop.f32.mrf.mxu0
    %v194 = vadd.f32 0.0, %v193
    %v195 = vpop.f32.mrf.mxu0
    %196 = vmatprep.mubr.bf16.mxu0 0
    %197 = vmatmul.mubr.bf16.gmra.mxu0 %v131
    %v198 = vpop.f32.mrf.mxu0
    %v199 = vadd.f32 0.0, %v198
    %v200 = vpop.f32.mrf.mxu0
    %v201 = vpop.f32.mrf.mxu0
    %v202 = vadd.f32 0.0, %v201
    %v203 = vpop.f32.mrf.mxu0
    %204 = vmatprep.mubr.bf16.mxu0 0
    %205 = vmatmul.mubr.bf16.gmra.mxu0 %v134
    %v206 = vpop.f32.mrf.mxu0
    %v207 = vadd.f32 0.0, %v206
    %v208 = vpop.f32.mrf.mxu0
    %v209 = vpop.f32.mrf.mxu0
    %v210 = vadd.f32 0.0, %v209
    %v211 = vpop.f32.mrf.mxu0
    %212 = vmatprep.mubr.bf16.mxu0 0
    %213 = vmatmul.mubr.bf16.gmra.mxu0 %v137
    %v214 = vpop.f32.mrf.mxu0
    %v215 = vadd.f32 0.0, %v214
    %v216 = vpop.f32.mrf.mxu0
    %v217 = vpop.f32.mrf.mxu0
    %v218 = vadd.f32 0.0, %v217
    %v219 = vpop.f32.mrf.mxu0
    %220 = vmatprep.mubr.bf16.mxu0 0
    %221 = vmatmul.mubr.bf16.gmra.mxu0 %v140
    %v222 = vpop.f32.mrf.mxu0
    %v223 = vadd.f32 0.0, %v222
    %v224 = vpop.f32.mrf.mxu0
    %v225 = vpop.f32.mrf.mxu0
    %v226 = vadd.f32 0.0, %v225
    %v227 = vpop.f32.mrf.mxu0
    %228 = vmatprep.mubr.bf16.mxu0 0
    %229 = vmatmul.mubr.bf16.gmra.mxu0 %v143
    %v230 = vpop.f32.mrf.mxu0
    %v231 = vadd.f32 0.0, %v230
    %v232 = vpop.f32.mrf.mxu0
    %v233 = vpop.f32.mrf.mxu0
    %v234 = vadd.f32 0.0, %v233
    %v235 = vpop.f32.mrf.mxu0
    %236 = vmatprep.mubr.bf16.mxu0 0
    %237 = vmatmul.mubr.bf16.gmra.mxu0 %v146
    %v238 = vpop.f32.mrf.mxu0
    %v239 = vadd.f32 0.0, %v238
    %v240 = vpop.f32.mrf.mxu0
    %v241 = vpop.f32.mrf.mxu0
    %v242 = vadd.f32 0.0, %v241
    %v243 = vpop.f32.mrf.mxu0
    %244 = vdwg.mxu0
    %vm245 = vcmask 523264
    %v246 = vsel %vm245, %v183, 0.0
    %v247 = vsel %vm245, %v186, 0.0
    %v248 = vadd.f32 %v246, %v247
    %v249 = vsel %vm245, %v191, 0.0
    %v250 = vadd.f32 %v248, %v249
    %v251 = vsel %vm245, %v194, 0.0
    %v252 = vadd.f32 %v250, %v251
    %v253 = vsel %vm245, %v199, 0.0
    %v254 = vadd.f32 %v252, %v253
    %v255 = vsel %vm245, %v202, 0.0
    %v256 = vadd.f32 %v254, %v255
    %v257 = vsel %vm245, %v207, 0.0
    %v258 = vadd.f32 %v256, %v257
    %v259 = vsel %vm245, %v210, 0.0
    %v260 = vadd.f32 %v258, %v259
    %v261 = vsel %vm245, %v215, 0.0
    %v262 = vadd.f32 %v260, %v261
    %v263 = vsel %vm245, %v218, 0.0
    %v264 = vadd.f32 %v262, %v263
    %v265 = vsel %vm245, %v223, 0.0
    %v266 = vadd.f32 %v264, %v265
    %v267 = vsel %vm245, %v226, 0.0
    %v268 = vadd.f32 %v266, %v267
    %v269 = vsel %vm245, %v231, 0.0
    %v270 = vadd.f32 %v268, %v269
    %v271 = vsel %vm245, %v234, 0.0
    %v272 = vadd.f32 %v270, %v271
    %v273 = vsel %vm245, %v239, 0.0
    %v274 = vadd.f32 %v272, %v273
    %v275 = vsel %vm245, %v242, 0.0
    %v276 = vadd.f32 %v274, %v275
    %v277 = vrot.slane %v276, 4
    %v278 = vadd.f32 %v276, %v277
    %v279 = vrot.slane %v278, 2
    %v280 = vadd.f32 %v278, %v279
    %v281 = vrot.slane %v280, 1
    %v282 = vadd.f32 %v280, %v281
    %v283 = vmul.f32 %v282, 0.0078125
    %v284 = vmul.f32 %v183, %v183
    %v285 = vmul.f32 %v186, %v186
    %v286 = vmul.f32 %v191, %v191
    %v287 = vmul.f32 %v194, %v194
    %v288 = vmul.f32 %v199, %v199
    %v289 = vmul.f32 %v202, %v202
    %v290 = vmul.f32 %v207, %v207
    %v291 = vmul.f32 %v210, %v210
    %v292 = vmul.f32 %v215, %v215
    %v293 = vmul.f32 %v218, %v218
    %v294 = vmul.f32 %v223, %v223
    %v295 = vmul.f32 %v226, %v226
    %v296 = vmul.f32 %v231, %v231
    %v297 = vmul.f32 %v234, %v234
    %v298 = vmul.f32 %v239, %v239
    %v299 = vmul.f32 %v242, %v242
    %v300 = vsel %vm245, %v284, 0.0
    %v301 = vsel %vm245, %v285, 0.0
    %v302 = vadd.f32 %v300, %v301
    %v303 = vsel %vm245, %v286, 0.0
    %v304 = vadd.f32 %v302, %v303
    %v305 = vsel %vm245, %v287, 0.0
    %v306 = vadd.f32 %v304, %v305
    %v307 = vsel %vm245, %v288, 0.0
    %v308 = vadd.f32 %v306, %v307
    %v309 = vsel %vm245, %v289, 0.0
    %v310 = vadd.f32 %v308, %v309
    %v311 = vsel %vm245, %v290, 0.0
    %v312 = vadd.f32 %v310, %v311
    %v313 = vsel %vm245, %v291, 0.0
    %v314 = vadd.f32 %v312, %v313
    %v315 = vsel %vm245, %v292, 0.0
    %v316 = vadd.f32 %v314, %v315
    %v317 = vsel %vm245, %v293, 0.0
    %v318 = vadd.f32 %v316, %v317
    %v319 = vsel %vm245, %v294, 0.0
    %v320 = vadd.f32 %v318, %v319
    %v321 = vsel %vm245, %v295, 0.0
    %v322 = vadd.f32 %v320, %v321
    %v323 = vsel %vm245, %v296, 0.0
    %v324 = vadd.f32 %v322, %v323
    %v325 = vsel %vm245, %v297, 0.0
    %v326 = vadd.f32 %v324, %v325
    %v327 = vsel %vm245, %v298, 0.0
    %v328 = vadd.f32 %v326, %v327
    %v329 = vsel %vm245, %v299, 0.0
    %v330 = vadd.f32 %v328, %v329
    %v331 = vrot.slane %v330, 4
    %v332 = vadd.f32 %v330, %v331
    %v333 = vrot.slane %v332, 2
    %v334 = vadd.f32 %v332, %v333
    %v335 = vrot.slane %v334, 1
    %v336 = vadd.f32 %v334, %v335
    %v337 = vmul.f32 %v336, 0.0078125
    %v338 = vmul.f32 %v283, %v283
    %v339 = vsub.f32 %v337, %v338
    %v340 = vmax.f32 %v339, 0.0
    %v341 = vadd.f32 %v340, 1e-05
    %v342 = vrsqrt.pop %v341
    %v343 = vld [vmem:[%s2] sm:$0x1]
    %v344 = vmul.f32 %v342, %v343
    %v345 = vld [vmem:[%s3] sm:$0x1]
    %v346 = vmul.f32 %v283, %v344
    %v347 = vsub.f32 %v345, %v346
    %v348 = vlaneseq
    %v349 = vshrl.u32 %v348, 7
    %v350 = vsub.s32 0, %v349
    %v351 = vrot.slane %v344, %v350
    %v352 = vmul.f32 %v183, %v351
    %v353 = vmul.f32 %v186, %v351
    %v354 = vmul.f32 %v191, %v351
    %v355 = vmul.f32 %v194, %v351
    %v356 = vmul.f32 %v199, %v351
    %v357 = vmul.f32 %v202, %v351
    %v358 = vmul.f32 %v207, %v351
    %v359 = vmul.f32 %v210, %v351
    %v360 = vmul.f32 %v215, %v351
    %v361 = vmul.f32 %v218, %v351
    %v362 = vmul.f32 %v223, %v351
    %v363 = vmul.f32 %v226, %v351
    %v364 = vmul.f32 %v231, %v351
    %v365 = vmul.f32 %v234, %v351
    %v366 = vmul.f32 %v239, %v351
    %v367 = vmul.f32 %v242, %v351
    %v369 = vlaneseq
    %v370 = vshrl.u32 %v369, 7
    %v371 = vsub.s32 0, %v370
    %v372 = vrot.slane %v347, %v371
    %v374 = vadd.f32 %v352, %v372
    %v375 = vadd.f32 %v353, %v372
    %v376 = vadd.f32 %v354, %v372
    %v377 = vadd.f32 %v355, %v372
    %v378 = vadd.f32 %v356, %v372
    %v379 = vadd.f32 %v357, %v372
    %v380 = vadd.f32 %v358, %v372
    %v381 = vadd.f32 %v359, %v372
    %v382 = vadd.f32 %v360, %v372
    %v383 = vadd.f32 %v361, %v372
    %v384 = vadd.f32 %v362, %v372
    %v385 = vadd.f32 %v363, %v372
    %v386 = vadd.f32 %v364, %v372
    %v387 = vadd.f32 %v365, %v372
    %v388 = vadd.f32 %v366, %v372
    %v389 = vadd.f32 %v367, %v372
    %v390 = vmax.f32 %v374, 0.0
    %v391 = vmax.f32 %v375, 0.0
    %v392 = vmax.f32 %v376, 0.0
    %v393 = vmax.f32 %v377, 0.0
    %v394 = vmax.f32 %v378, 0.0
    %v395 = vmax.f32 %v379, 0.0
    %v396 = vmax.f32 %v380, 0.0
    %v397 = vmax.f32 %v381, 0.0
    %v398 = vmax.f32 %v382, 0.0
    %v399 = vmax.f32 %v383, 0.0
    %v400 = vmax.f32 %v384, 0.0
    %v401 = vmax.f32 %v385, 0.0
    %v402 = vmax.f32 %v386, 0.0
    %v403 = vmax.f32 %v387, 0.0
    %v404 = vmax.f32 %v388, 0.0
    %v405 = vmax.f32 %v389, 0.0
    %v406 = vpack.c.bf16 %v391, %v390
    %v407 = vpack.c.bf16 %v393, %v392
    %v408 = vpack.c.bf16 %v395, %v394
    %v409 = vpack.c.bf16 %v397, %v396
    %v410 = vpack.c.bf16 %v399, %v398
    %v411 = vpack.c.bf16 %v401, %v400
    %v412 = vpack.c.bf16 %v403, %v402
    %v413 = vpack.c.bf16 %v405, %v404
    %v422 = vunpack.c.l.b16 %v406
    %v423 = vunpack.c.h.b16 %v406
    %v424 = vunpack.c.l.b16 %v407
    %v425 = vunpack.c.h.b16 %v407
    %v426 = vunpack.c.l.b16 %v408
    %v427 = vunpack.c.h.b16 %v408
    %v428 = vunpack.c.l.b16 %v409
    %v429 = vunpack.c.h.b16 %v409
    %v430 = vunpack.c.l.b16 %v410
    %v431 = vunpack.c.h.b16 %v410
    %v432 = vunpack.c.l.b16 %v411
    %v433 = vunpack.c.h.b16 %v411
    %v434 = vunpack.c.l.b16 %v412
    %v435 = vunpack.c.h.b16 %v412
    %v436 = vunpack.c.l.b16 %v413
    %v437 = vunpack.c.h.b16 %v413
    %v438 = vpack.c.b16 %v422, %v422
    %v439 = vpack.c.b16 %v423, %v423
    %v440 = vpack.c.b16 %v424, %v424
    %v441 = vpack.c.b16 %v425, %v425
    %v442 = vpack.c.b16 %v426, %v426
    %v443 = vpack.c.b16 %v427, %v427
    %v444 = vpack.c.b16 %v428, %v428
    %v445 = vpack.c.b16 %v429, %v429
    %v446 = vpack.c.b16 %v430, %v430
    %v447 = vpack.c.b16 %v431, %v431
    %v448 = vpack.c.b16 %v432, %v432
    %v449 = vpack.c.b16 %v433, %v433
    %v450 = vpack.c.b16 %v434, %v434
    %v451 = vpack.c.b16 %v435, %v435
    %v452 = vpack.c.b16 %v436, %v436
    %v453 = vpack.c.b16 %v437, %v437
    %vm470 = vcmask 519168
    %471 = vst.msk [vmem:[#allocation2] sm:$0xf] %vm470, %v438
    %472 = vst.msk [vmem:[#allocation2 + $0x4] sm:$0xf] %vm470, %v439
    %473 = vst.msk [vmem:[#allocation2 + $0x8] sm:$0xf] %vm470, %v440
    %474 = vst.msk [vmem:[#allocation2 + $0xc] sm:$0xf] %vm470, %v441
    %475 = vst.msk [vmem:[#allocation2 + $0x10] sm:$0xf] %vm470, %v442
    %476 = vst.msk [vmem:[#allocation2 + $0x14] sm:$0xf] %vm470, %v443
    %477 = vst.msk [vmem:[#allocation2 + $0x18] sm:$0xf] %vm470, %v444
    %478 = vst.msk [vmem:[#allocation2 + $0x1c] sm:$0xf] %vm470, %v445
    %479 = vst.msk [vmem:[#allocation2 + $0x20] sm:$0xf] %vm470, %v446
    %480 = vst.msk [vmem:[#allocation2 + $0x24] sm:$0xf] %vm470, %v447
    %481 = vst.msk [vmem:[#allocation2 + $0x28] sm:$0xf] %vm470, %v448
    %482 = vst.msk [vmem:[#allocation2 + $0x2c] sm:$0xf] %vm470, %v449
    %483 = vst.msk [vmem:[#allocation2 + $0x30] sm:$0xf] %vm470, %v450
    %484 = vst.msk [vmem:[#allocation2 + $0x34] sm:$0xf] %vm470, %v451
    %485 = vst.msk [vmem:[#allocation2 + $0x38] sm:$0xf] %vm470, %v452
    %486 = vst.msk [vmem:[#allocation2 + $0x3c] sm:$0xf] %vm470, %v453
    // Predicated region
    $region18: #{_down_block.1} parent=1 // pred_check
      _
    $region19: #{_down_block.1} parent=1 // pred_check_branch
      %488 = sbr.rel (0) target = $region21
    $region20: #{_down_block.1} parent=1 // pred_region
      %s490 = ssub.s32 1024, 1024
      %491 = vsyncadd [#allocation3], %s490
      %s492 = sshll.u32 [#allocation2], 4
      %s493 = int_to_ptr.vmem [resolvable:$true] %s492
      %498 = dma.vmem_to_hbm [thread:$0]  %s493, 1024, %s4, [#allocation3], 64, 64, 4
    $region21: #{_down_block.1} parent=1 // pred_fallthru
      _
    // Predicated region
    $region22: #{_down_block.1} parent=1 // pred_check
      _
    $region23: #{_down_block.1} parent=1 // pred_check_branch
      %500 = sbr.rel (0) target = $region25
    $region24: #{_down_block.1} parent=1 // pred_region
      %501 = dma.done [#allocation3], 1024
    $region25: #{_down_block.1} parent=1 // pred_fallthru
      _
    %502 = vsyncpa [#allocation3], 1

</llo_original>
